<compile_context>
chip_gen: v6e
topology: v6e:2x2x1
jax: 0.10.0
libtpu: 0.0.40
codegen_flags: <defaults>
</compile_context>

<pallas_src>
import functools
import math

import jax
import jax.numpy as jnp
from jax.experimental import pallas as pl
from jax.experimental.pallas import tpu as pltpu


# ---------------------------------------------------------------------------
# Kernel: one (batch, head, L-tile) of scaled-dot-product attention
# ---------------------------------------------------------------------------
def _full_attention_kernel(q_ref, k_ref, v_ref, o_ref, *rest,
                           scale, mask_flag, block_l):
    """q (bl, E), k (S, E), v (S, D) -> o (bl, D) [, attn (bl, S)]."""
    a_ref = rest[0] if rest else None

    q = q_ref[...]                      # (bl, E) — input dtype feeds the MXU
    k = k_ref[...]                      # (S, E)
    v = v_ref[...]                      # (S, D)

    # scores = q @ k^T as an NT contraction: no materialized transpose of K.
    s = jax.lax.dot_general(
        q, k, dimension_numbers=(((1,), (1,)), ((), ())),
        preferred_element_type=jnp.float32) * scale          # (bl, S) f32

    if mask_flag:
        # TriangularCausalMask: mask keys strictly above the diagonal.
        l0 = pl.program_id(2) * block_l
        row = jax.lax.broadcasted_iota(jnp.int32, s.shape, 0) + l0
        col = jax.lax.broadcasted_iota(jnp.int32, s.shape, 1)
        s = jnp.where(col > row, jnp.float32(-1e30), s)

    # Numerically stable softmax in f32.
    m = jnp.max(s, axis=-1, keepdims=True)
    p = jnp.exp(s - m)
    denom = jnp.sum(p, axis=-1, keepdims=True)
    attn = p * pl.reciprocal(denom, approx=True)             # EUP slot ≈ free

    o_ref[...] = jnp.dot(attn.astype(v.dtype), v,
                         preferred_element_type=jnp.float32).astype(o_ref.dtype)
    if a_ref is not None:
        a_ref[...] = attn.astype(a_ref.dtype)


def pallas_full_attention(q, k, v, *, mask_flag, scale, output_attention,
                          block_l=256):
    """q: (B,H,L,E), k: (B,H,S,E), v: (B,H,S,D) head-major.

    Returns (out (B,H,L,D), attn (B,H,L,S) or None).
    """
    B, H, L, E = q.shape
    S, D = v.shape[2], v.shape[3]

    bl = min(L, block_l)                # query-axis tile (VMEM-bounded)
    nl = pl.cdiv(L, bl)

    kernel = functools.partial(_full_attention_kernel, scale=scale,
                               mask_flag=mask_flag, block_l=bl)

    in_specs = [
        pl.BlockSpec((None, None, bl, E), lambda b, h, l: (b, h, l, 0)),
        pl.BlockSpec((None, None, S, E), lambda b, h, l: (b, h, 0, 0)),
        pl.BlockSpec((None, None, S, D), lambda b, h, l: (b, h, 0, 0)),
    ]
    out_shapes = [jax.ShapeDtypeStruct((B, H, L, D), q.dtype)]
    out_specs = [pl.BlockSpec((None, None, bl, D), lambda b, h, l: (b, h, l, 0))]
    if output_attention:
        # TODO(synk): allow bf16 here to further halve the A writeback.
        out_shapes.append(jax.ShapeDtypeStruct((B, H, L, S), q.dtype))
        out_specs.append(
            pl.BlockSpec((None, None, bl, S), lambda b, h, l: (b, h, l, 0)))

    # VMEM budget: double-buffered blocks + f32 softmax intermediates + margin.
    # For very large shapes on v7x (64 MiB VMEM) reduce block_l.
    itemsize = jnp.dtype(q.dtype).itemsize
    block_bytes = (bl * E + S * E + S * D + bl * D) * itemsize
    if output_attention:
        block_bytes += bl * S * itemsize
    est = 2 * block_bytes + 3 * bl * S * 4 + (2 << 20)
    vmem_limit = min(max(est, 32 << 20), 128 << 20)

    results = pl.pallas_call(
        kernel,
        out_shape=tuple(out_shapes),
        grid_spec=pltpu.PrefetchScalarGridSpec(
            num_scalar_prefetch=0,
            grid=(B, H, nl),
            in_specs=in_specs,
            out_specs=tuple(out_specs),
        ),
        compiler_params=pltpu.CompilerParams(
            dimension_semantics=("parallel", "parallel", "parallel"),
            vmem_limit_bytes=vmem_limit),
    )(q, k, v)

    if output_attention:
        return results[0], results[1]
    return results[0], None


# ---------------------------------------------------------------------------
# FullAttention.forward (eval mode)
# ---------------------------------------------------------------------------
def full_attention_forward(queries, keys, values, attn_mask=None,
                           tau=None, delta=None, *,
                           mask_flag=True, scale=None,
                           output_attention=False, block_l=256):
    """queries (B,L,H,E), keys (B,S,H,E), values (B,S,H,D)
       -> (V (B,L,H,D), A (B,H,L,S) or None)."""
    # tau/delta are unused by FullAttention (de-stationary factors).
    # TODO(synk): train-mode attention dropout is not implemented (eval only).
    # TODO(synk): only the default TriangularCausalMask is supported; an
    # explicit attn_mask tensor is assumed to be that same causal mask.
    B, L, H, E = queries.shape
    _, S, _, D = values.shape
    if mask_flag and L != S:
        raise ValueError("causal mask (mask_flag=True) requires L == S")
    scale_val = float(scale) if scale is not None else 1.0 / math.sqrt(E)

    # Head-major relayout so each (batch, head) tile is a contiguous,
    # lane-dense 2-D slab for the kernel DMAs.
    qh = jnp.transpose(queries, (0, 2, 1, 3))   # (B, H, L, E)
    kh = jnp.transpose(keys, (0, 2, 1, 3))      # (B, H, S, E)
    vh = jnp.transpose(values, (0, 2, 1, 3))    # (B, H, S, D)

    out, attn = pallas_full_attention(
        qh, kh, vh, mask_flag=mask_flag, scale=scale_val,
        output_attention=output_attention, block_l=block_l)

    V = jnp.transpose(out, (0, 2, 1, 3))        # (B, L, H, D) == 'blhd'
    return (V, attn) if output_attention else (V, None)


# ---------------------------------------------------------------------------
# Pure-JAX reference (for correctness checking only)
# ---------------------------------------------------------------------------
def _full_attention_reference(queries, keys, values, *, mask_flag, scale):
    B, L, H, E = queries.shape
    S = keys.shape[1]
    scale_val = scale if scale is not None else 1.0 / math.sqrt(E)
    scores = jnp.einsum('blhe,bshe->bhls', queries, keys)
    if mask_flag:
        causal = jnp.triu(jnp.ones((L, S), dtype=bool), k=1)
        scores = jnp.where(causal[None, None], -jnp.inf, scores)
    A = jax.nn.softmax(scale_val * scores, axis=-1)
    V = jnp.einsum('bhls,bshd->blhd', A, values)
    return V, A


# ---------------------------------------------------------------------------
if __name__ == "__main__":
    B, L, S, H, E, D = 2, 8, 8, 4, 8, 8

    key = jax.random.PRNGKey(0)
    kq, kk, kv = jax.random.split(key, 3)
    queries = jax.random.normal(kq, (B, L, H, E), jnp.float32)
    keys_in = jax.random.normal(kk, (B, S, H, E), jnp.float32)
    values_in = jax.random.normal(kv, (B, S, H, D), jnp.float32)

    # 1) Default FullAttention(): causal mask, no attention output returned.
    v1, a1 = full_attention_forward(queries, keys_in, values_in, attn_mask=None)
    jax.block_until_ready(v1)
    assert v1.shape == (B, L, H, D) and a1 is None

    # 2) iTransformer-encoder config: no mask, return attention weights.
    v2, a2 = full_attention_forward(queries, keys_in, values_in, attn_mask=None,
                                    mask_flag=False, output_attention=True)
    jax.block_until_ready(v2)
    jax.block_until_ready(a2)
    assert v2.shape == (B, L, H, D) and a2.shape == (B, H, L, S)

    # Numerical check against a pure-JAX reference.
    r1, _ = _full_attention_reference(queries, keys_in, values_in,
                                      mask_flag=True, scale=None)
    r2, ra2 = _full_attention_reference(queries, keys_in, values_in,
                                        mask_flag=False, scale=None)
    assert jnp.allclose(v1, r1, atol=2e-2, rtol=2e-2)
    assert jnp.allclose(v2, r2, atol=2e-2, rtol=2e-2)
    assert jnp.allclose(a2, ra2, atol=2e-2, rtol=2e-2)

    print("KERNEL_OK")
</pallas_src>

<mosaic_0001>
module attributes {stable_mosaic.version = 11 : i64} {
  func.func @_full_attention_kernel(%arg0: i32, %arg1: i32, %arg2: i32, %arg3: memref<1x1x8x8xf32, #tpu.memory_space<vmem>>, %arg4: memref<1x1x8x8xf32, #tpu.memory_space<vmem>>, %arg5: memref<1x1x8x8xf32, #tpu.memory_space<vmem>>, %arg6: memref<1x1x8x8xf32, #tpu.memory_space<vmem>>) attributes {dimension_semantics = [#tpu.dimension_semantics<parallel>, #tpu.dimension_semantics<parallel>, #tpu.dimension_semantics<parallel>], iteration_bounds = array<i64: 2, 4, 1>, scalar_prefetch = 0 : i64, scratch_operands = 0 : i64, tpu.core_type = #tpu.core_type<tc>, window_params = [{transform_indices = @transform_0, window_bounds = array<i64: 1, 1, 8, 8>}, {transform_indices = @transform_1, window_bounds = array<i64: 1, 1, 8, 8>}, {transform_indices = @transform_2, window_bounds = array<i64: 1, 1, 8, 8>}, {transform_indices = @transform_3, window_bounds = array<i64: 1, 1, 8, 8>}]} {
    %c0 = arith.constant 0 : index
    %c0_0 = arith.constant 0 : index
    %c0_1 = arith.constant 0 : index
    %c0_2 = arith.constant 0 : index
    %0 = vector.load %arg3[%c0, %c0_0, %c0_1, %c0_2] : memref<1x1x8x8xf32, #tpu.memory_space<vmem>>, vector<1x1x8x8xf32>
    %1 = vector.shape_cast %0 : vector<1x1x8x8xf32> to vector<8x8xf32>
    %c0_3 = arith.constant 0 : index
    %c0_4 = arith.constant 0 : index
    %c0_5 = arith.constant 0 : index
    %c0_6 = arith.constant 0 : index
    %2 = vector.load %arg4[%c0_3, %c0_4, %c0_5, %c0_6] : memref<1x1x8x8xf32, #tpu.memory_space<vmem>>, vector<1x1x8x8xf32>
    %3 = vector.shape_cast %2 : vector<1x1x8x8xf32> to vector<8x8xf32>
    %c0_7 = arith.constant 0 : index
    %c0_8 = arith.constant 0 : index
    %c0_9 = arith.constant 0 : index
    %c0_10 = arith.constant 0 : index
    %4 = vector.load %arg5[%c0_7, %c0_8, %c0_9, %c0_10] : memref<1x1x8x8xf32, #tpu.memory_space<vmem>>, vector<1x1x8x8xf32>
    %5 = vector.shape_cast %4 : vector<1x1x8x8xf32> to vector<8x8xf32>
    %cst = arith.constant dense<0.000000e+00> : vector<8x8xf32>
    %6 = tpu.matmul %1, %3, %cst {dimension_numbers = #tpu.dot_dimension_numbers<[1], [1], [0], [0], [0, 0, 1, 0], [], []>} : vector<8x8xf32>, vector<8x8xf32>, vector<8x8xf32> -> vector<8x8xf32>
    %cst_11 = arith.constant 0.353553385 : f32
    %7 = vector.broadcast %cst_11 : f32 to vector<8x8xf32>
    %8 = arith.mulf %6, %7 : vector<8x8xf32>
    %c8_i32 = arith.constant 8 : i32
    %9 = arith.muli %arg2, %c8_i32 : i32
    %10 = tpu.iota {dimensions = array<i32: 0>} : vector<8x8xi32>
    %11 = vector.broadcast %9 : i32 to vector<8x8xi32>
    %12 = arith.addi %10, %11 : vector<8x8xi32>
    %13 = tpu.iota {dimensions = array<i32: 1>} : vector<8x8xi32>
    %14 = arith.cmpi sgt, %13, %12 : vector<8x8xi32>
    %cst_12 = arith.constant -1.000000e+30 : f32
    %15 = vector.broadcast %cst_12 : f32 to vector<8x8xf32>
    %16 = arith.select %14, %15, %8 : vector<8x8xi1>, vector<8x8xf32>
    %cst_13 = arith.constant dense<0xFF800000> : vector<8xf32>
    %17 = vector.multi_reduction <maximumf>, %16, %cst_13 [1] : vector<8x8xf32> to vector<8xf32>
    %18 = vector.shape_cast %17 : vector<8xf32> to vector<8x1xf32>
    %19 = vector.broadcast %18 : vector<8x1xf32> to vector<8x8xf32>
    %20 = arith.subf %16, %19 : vector<8x8xf32>
    %21 = math.exp %20 : vector<8x8xf32>
    %cst_14 = arith.constant dense<0.000000e+00> : vector<8xf32>
    %22 = vector.multi_reduction <add>, %21, %cst_14 [1] : vector<8x8xf32> to vector<8xf32>
    %23 = vector.shape_cast %22 : vector<8xf32> to vector<8x1xf32>
    %24 = tpu.reciprocal %23 {approx = true} : vector<8x1xf32> -> vector<8x1xf32>
    %25 = vector.broadcast %24 : vector<8x1xf32> to vector<8x8xf32>
    %26 = arith.mulf %21, %25 : vector<8x8xf32>
    %cst_15 = arith.constant dense<0.000000e+00> : vector<8x8xf32>
    %27 = tpu.matmul %26, %5, %cst_15 {dimension_numbers = #tpu.dot_dimension_numbers<[1], [0], [0], [1], [0, 0, 1, 1], [], []>} : vector<8x8xf32>, vector<8x8xf32>, vector<8x8xf32> -> vector<8x8xf32>
    %c0_16 = arith.constant 0 : index
    %c0_17 = arith.constant 0 : index
    %c0_18 = arith.constant 0 : index
    %c0_19 = arith.constant 0 : index
    %28 = vector.load %arg6[%c0_16, %c0_17, %c0_18, %c0_19] : memref<1x1x8x8xf32, #tpu.memory_space<vmem>>, vector<1x1x8x8xf32>
    %29 = vector.shape_cast %28 : vector<1x1x8x8xf32> to vector<8x8xf32>
    %30 = vector.shape_cast %27 : vector<8x8xf32> to vector<1x1x8x8xf32>
    tpu.vector_store %arg6[%c0_16, %c0_17, %c0_18, %c0_19], %30 {strides = array<i32>} : memref<1x1x8x8xf32, #tpu.memory_space<vmem>>, vector<1x1x8x8xf32>,
    return
  }
  func.func @transform_0(%arg0: i32, %arg1: i32, %arg2: i32) -> (i32, i32, i32, i32) {
    %c0_i32 = arith.constant 0 : i32
    %c0_i32_0 = arith.constant 0 : i32
    return %arg0, %arg1, %arg2, %c0_i32 : i32, i32, i32, i32
  }
  func.func @transform_1(%arg0: i32, %arg1: i32, %arg2: i32) -> (i32, i32, i32, i32) {
    %c0_i32 = arith.constant 0 : i32
    %c0_i32_0 = arith.constant 0 : i32
    %c0_i32_1 = arith.constant 0 : i32
    return %arg0, %arg1, %c0_i32, %c0_i32_0 : i32, i32, i32, i32
  }
  func.func @transform_2(%arg0: i32, %arg1: i32, %arg2: i32) -> (i32, i32, i32, i32) {
    %c0_i32 = arith.constant 0 : i32
    %c0_i32_0 = arith.constant 0 : i32
    %c0_i32_1 = arith.constant 0 : i32
    return %arg0, %arg1, %c0_i32, %c0_i32_0 : i32, i32, i32, i32
  }
  func.func @transform_3(%arg0: i32, %arg1: i32, %arg2: i32) -> (i32, i32, i32, i32) {
    %c0_i32 = arith.constant 0 : i32
    %c0_i32_0 = arith.constant 0 : i32
    return %arg0, %arg1, %arg2, %c0_i32 : i32, i32, i32, i32
  }
}

</mosaic_0001>

<llo_original>
// kernel: tpu_custom_call.1
$region0: #{tpu_custom_call.1}
  #allocation0 [shape = 'u32[]', space=smem, size = 0x4, offset = 0x4, fixed_abs, tag = 'smem constant byte address 0x4 - core index']
  #allocation1 [shape = 'u32[144,128]{1,0:T(1,128)}', space=vmem, size = 0x12000, scoped, tag = 'internal scratch']
  %s0 = inlined_call_operand.hbm [shape: f32[2,4,8,8], index: 0, kind: input, shape index: {}]
  %s1 = inlined_call_operand.hbm [shape: f32[2,4,8,8], index: 1, kind: input, shape index: {}]
  %s2 = inlined_call_operand.hbm [shape: f32[2,4,8,8], index: 2, kind: input, shape index: {}]
  %s3 = inlined_call_operand.hbm [shape: f32[2,4,8,8], index: 3, kind: output, shape index: {}]
  %s4 = sld [smem:[#allocation0]]
  $region57: #{tpu_custom_call.1} parent=0
    _
  %s6 = ssub.s32 1, %s4
  %s7 = scalar_select 0, %s6, %s4
  $region1: #{tpu_custom_call.1} parent=0
    #allocation2 [shape = 'u8[8192]{0}', space=vmem, size = 0x2000, scoped, tag = 'input window, operand 0']
    #allocation3 [shape = 's32[2]{0}', space=sflag, size = 0x8, scoped, tag = 'scoped memory for tpu_custom_call.1']
    #allocation4 [shape = 's32[2]{0}', space=sflag, size = 0x8, scoped, tag = 'scoped memory for tpu_custom_call.1']
    #allocation5 [shape = 'u8[8192]{0}', space=vmem, size = 0x2000, scoped, tag = 'input window, operand 1']
    #allocation6 [shape = 's32[2]{0}', space=sflag, size = 0x8, scoped, tag = 'scoped memory for tpu_custom_call.1']
    #allocation7 [shape = 'u8[8192]{0}', space=vmem, size = 0x2000, scoped, tag = 'input window, operand 2']
    #allocation8 [shape = 'u8[8192]{0}', space=vmem, size = 0x2000, scoped, tag = 'output window, operand 0']
    %8 = vsyncpa [#allocation3], 0
    %s9 = scalar_lea.sflag [#allocation3], 1
    %10 = vsyncpa %s9, 0
    %11 = vsyncpa [#allocation6], 0
    %s12 = scalar_lea.sflag [#allocation6], 1
    %13 = vsyncpa %s12, 0
    %14 = vsyncpa [#allocation4], 0
    %s15 = scalar_lea.sflag [#allocation4], 1
    %16 = vsyncpa %s15, 0
    loop: start=0, step=1, limit=10
    $region2: #{tpu_custom_call.1} parent=1 // loop_pre_header
      _
    $region3: #{tpu_custom_call.1} parent=1 // loop_header
      %s18 = sphi 0, %s22
      %p19 = scmp.ge.s32.totalorder %s18, 10
      %s25 = sphi 0, %s44
      %s26 = sphi 0, %s40
      %s27 = sphi 0, %s36
      %s28 = sphi 0, %s25
      %s29 = sphi 0, %s26
      %s30 = sphi 0, %s27
      %s31 = sphi 0, %s28
      %s32 = sphi 0, %s29
      %s33 = sphi 0, %s30
      %s51 = sphi 0, %s53
      %s54 = sphi 0, %s51
      %s55 = sphi 0, %s54
      %s71 = sphi 0, %s55
      %s79 = sphi 0, %s81
      %s82 = sphi 0, %s79
      %s83 = sphi 0, %s82
      %s99 = sphi 0, %s83
      %s107 = sphi 0, %s109
      %s110 = sphi 0, %s107
      %s111 = sphi 0, %s110
      %s127 = sphi 0, %s111
      %s137 = sphi 0, %s139
      %s140 = sphi 0, %s137
      %s141 = sphi 0, %s140
      %s157 = sphi 0, %s141
    $region4: #{tpu_custom_call.1} parent=1 // loop_header_branch
      %21 = sbr.rel (%p19) target = $region8
    $region5: #{tpu_custom_call.1} parent=1 // loop_body
      %s23 = ssub.s32 %s18, 1
      %s24 = ssub.s32 %s18, 2
      %s34 = sadd.s32 1, %s27
      %p35 = scmp.ge.s32.totalorder %s34, 1
      %s36 = scalar_select %p35, 0, %s34
      %s37 = sadd.s32 1, %s26
      %s38 = scalar_select %p35, %s37, %s26
      %p39 = scmp.ge.s32.totalorder %s38, 4
      %s40 = scalar_select %p39, 0, %s38
      %s41 = sadd.s32 1, %s25
      %s42 = scalar_select %p39, %s41, %s25
      %p43 = scmp.ge.s32.totalorder %s42, 2
      %s44 = scalar_select %p43, 0, %s42
      %s45 = ssub.s32 %s25, %s44
      %s46 = ssub.s32 %s26, %s40
      %s47 = sor.u32 %s45, %s46
      %s48 = ssub.s32 %s27, %s36
      %s49 = sor.u32 %s47, %s48
      %p50 = scmp.eq.s32.totalorder %s49, 0
      %s52 = sadd.s32 %s51, 1
      %s53 = scalar_select %p50, %s51, %s52
      %p56 = pneg %p50
      %p57 = scmp.eq.s32.totalorder %s18, 7
      %p58 = por %p56, %p57
      %p59 = scmp.ne.s32.totalorder %s51, %s54
      %p60 = scmp.eq.s32.totalorder %s18, 0
      %p61 = por %p59, %p60
      %p62 = scmp.ne.s32.totalorder %s51, %s54
      %p63 = scmp.eq.s32.totalorder %s23, 7
      %p64 = por %p62, %p63
      %p65 = scmp.ne.s32.totalorder %s54, %s55
      %p66 = scmp.eq.s32.totalorder %s23, 0
      %p67 = por %p65, %p66
      %p68 = scmp.ne.s32.totalorder %s54, %s55
      %p69 = scmp.eq.s32.totalorder %s24, 7
      %p70 = por %p68, %p69
      %p72 = scmp.ne.s32.totalorder %s55, %s71
      %p73 = scmp.eq.s32.totalorder %s24, 0
      %p74 = por %p72, %p73
      %s75 = ssub.s32 %s25, %s44
      %s76 = ssub.s32 %s26, %s40
      %s77 = sor.u32 %s75, %s76
      %p78 = scmp.eq.s32.totalorder %s77, 0
      %s80 = sadd.s32 %s79, 1
      %s81 = scalar_select %p78, %s79, %s80
      %p84 = pneg %p78
      %p85 = scmp.eq.s32.totalorder %s18, 7
      %p86 = por %p84, %p85
      %p87 = scmp.ne.s32.totalorder %s79, %s82
      %p88 = scmp.eq.s32.totalorder %s18, 0
      %p89 = por %p87, %p88
      %p90 = scmp.ne.s32.totalorder %s79, %s82
      %p91 = scmp.eq.s32.totalorder %s23, 7
      %p92 = por %p90, %p91
      %p93 = scmp.ne.s32.totalorder %s82, %s83
      %p94 = scmp.eq.s32.totalorder %s23, 0
      %p95 = por %p93, %p94
      %p96 = scmp.ne.s32.totalorder %s82, %s83
      %p97 = scmp.eq.s32.totalorder %s24, 7
      %p98 = por %p96, %p97
      %p100 = scmp.ne.s32.totalorder %s83, %s99
      %p101 = scmp.eq.s32.totalorder %s24, 0
      %p102 = por %p100, %p101
      %s103 = ssub.s32 %s25, %s44
      %s104 = ssub.s32 %s26, %s40
      %s105 = sor.u32 %s103, %s104
      %p106 = scmp.eq.s32.totalorder %s105, 0
      %s108 = sadd.s32 %s107, 1
      %s109 = scalar_select %p106, %s107, %s108
      %p112 = pneg %p106
      %p113 = scmp.eq.s32.totalorder %s18, 7
      %p114 = por %p112, %p113
      %p115 = scmp.ne.s32.totalorder %s107, %s110
      %p116 = scmp.eq.s32.totalorder %s18, 0
      %p117 = por %p115, %p116
      %p118 = scmp.ne.s32.totalorder %s107, %s110
      %p119 = scmp.eq.s32.totalorder %s23, 7
      %p120 = por %p118, %p119
      %p121 = scmp.ne.s32.totalorder %s110, %s111
      %p122 = scmp.eq.s32.totalorder %s23, 0
      %p123 = por %p121, %p122
      %p124 = scmp.ne.s32.totalorder %s110, %s111
      %p125 = scmp.eq.s32.totalorder %s24, 7
      %p126 = por %p124, %p125
      %p128 = scmp.ne.s32.totalorder %s111, %s127
      %p129 = scmp.eq.s32.totalorder %s24, 0
      %p130 = por %p128, %p129
      %s131 = ssub.s32 %s25, %s44
      %s132 = ssub.s32 %s26, %s40
      %s133 = sor.u32 %s131, %s132
      %s134 = ssub.s32 %s27, %s36
      %s135 = sor.u32 %s133, %s134
      %p136 = scmp.eq.s32.totalorder %s135, 0
      %s138 = sadd.s32 %s137, 1
      %s139 = scalar_select %p136, %s137, %s138
      %p142 = pneg %p136
      %p143 = scmp.eq.s32.totalorder %s18, 7
      %p144 = por %p142, %p143
      %p145 = scmp.ne.s32.totalorder %s137, %s140
      %p146 = scmp.eq.s32.totalorder %s18, 0
      %p147 = por %p145, %p146
      %p148 = scmp.ne.s32.totalorder %s137, %s140
      %p149 = scmp.eq.s32.totalorder %s23, 7
      %p150 = por %p148, %p149
      %p151 = scmp.ne.s32.totalorder %s140, %s141
      %p152 = scmp.eq.s32.totalorder %s23, 0
      %p153 = por %p151, %p152
      %p154 = scmp.ne.s32.totalorder %s140, %s141
      %p155 = scmp.eq.s32.totalorder %s24, 7
      %p156 = por %p154, %p155
      %p158 = scmp.ne.s32.totalorder %s141, %s157
      %p159 = scmp.eq.s32.totalorder %s24, 0
      %p160 = por %p158, %p159
      %p161 = scmp.le.s32.totalorder 1, %s18
      %p162 = scmp.lt.s32.totalorder %s18, 9
      %p163 = pnand %p161, %p162
      %p164 = pneg %p163
      // Predicated region
      $region9: #{tpu_custom_call.1} parent=5 // pred_check
        _
      $region10: #{tpu_custom_call.1} parent=5 // pred_check_branch
        %166 = sbr.rel (%p163) target = $region12
      $region11: #{tpu_custom_call.1} parent=5 // pred_region
        %s167 = ssub.s32 %s18, 1
      $region12: #{tpu_custom_call.1} parent=5 // pred_fallthru
        _
      %p168 = scmp.lt.s32.totalorder %s18, 8
      // Predicated region
      $region13: #{tpu_custom_call.1} parent=5 // pred_check
        %p169 = pneg %p168
      $region14: #{tpu_custom_call.1} parent=5 // pred_check_branch
        %171 = sbr.rel (%p169) target = $region16
      $region15: #{tpu_custom_call.1} parent=5 // pred_region
        // Predicated region
        $region17: #{tpu_custom_call.1} parent=15 // pred_check
          %p172 = pneg %p61
        $region18: #{tpu_custom_call.1} parent=15 // pred_check_branch
          %174 = sbr.rel (%p172) target = $region20
        $region19: #{tpu_custom_call.1} parent=15 // pred_region
          %s175 = sand.u32 %s51, 1
          %s176 = scalar_lea.sflag [#allocation3], %s175
          %s177 = sand.u32 %s51, 1
          %s178 = smul.addr %s177, 8
          %s179 = scalar_lea.vmem [#allocation2], %s178
          %s181 = ssub.s32 128, 128
          %182 = vsyncadd %s176, %s181
          %s183 = sadd.s32 %s27, %s26
          %s184 = smul.addr %s25, 4
          %s185 = sadd.s32 %s183, %s184
          %s186 = smul.addr %s185, 128
          %s187 = scalar_lea.hbm %s0, %s186
          %s189 = sshll.u32 %s179, 4
          %s190 = int_to_ptr.vmem [resolvable:$true] %s189
          %192 = dma.hbm_to_vmem [thread:$0]  %s187, 128, %s190, %s176
        $region20: #{tpu_custom_call.1} parent=15 // pred_fallthru
          _
        // Predicated region
        $region21: #{tpu_custom_call.1} parent=15 // pred_check
          %p193 = pneg %p89
        $region22: #{tpu_custom_call.1} parent=15 // pred_check_branch
          %195 = sbr.rel (%p193) target = $region24
        $region23: #{tpu_custom_call.1} parent=15 // pred_region
          %s196 = sand.u32 %s18, 1
          %s197 = scalar_lea.sflag [#allocation6], %s196
          %s198 = sand.u32 %s79, 1
          %s199 = smul.addr %s198, 8
          %s200 = scalar_lea.vmem [#allocation5], %s199
          %s202 = ssub.s32 128, 128
          %203 = vsyncadd %s197, %s202
          %s204 = smul.addr %s25, 4
          %s205 = sadd.s32 %s26, %s204
          %s206 = smul.addr %s205, 128
          %s207 = scalar_lea.hbm %s1, %s206
          %s209 = sshll.u32 %s200, 4
          %s210 = int_to_ptr.vmem [resolvable:$true] %s209
          %212 = dma.hbm_to_vmem [thread:$0]  %s207, 128, %s210, %s197
        $region24: #{tpu_custom_call.1} parent=15 // pred_fallthru
          _
        // Predicated region
        $region25: #{tpu_custom_call.1} parent=15 // pred_check
          %p213 = pneg %p117
        $region26: #{tpu_custom_call.1} parent=15 // pred_check_branch
          %215 = sbr.rel (%p213) target = $region28
        $region27: #{tpu_custom_call.1} parent=15 // pred_region
          %s216 = sand.u32 %s18, 1
          %s217 = scalar_lea.sflag [#allocation6], %s216
          %s218 = sand.u32 %s107, 1
          %s219 = smul.addr %s218, 8
          %s220 = scalar_lea.vmem [#allocation7], %s219
          %s222 = ssub.s32 128, 128
          %223 = vsyncadd %s217, %s222
          %s224 = smul.addr %s25, 4
          %s225 = sadd.s32 %s26, %s224
          %s226 = smul.addr %s225, 128
          %s227 = scalar_lea.hbm %s2, %s226
          %s229 = sshll.u32 %s220, 4
          %s230 = int_to_ptr.vmem [resolvable:$true] %s229
          %232 = dma.hbm_to_vmem [thread:$0]  %s227, 128, %s230, %s217
        $region28: #{tpu_custom_call.1} parent=15 // pred_fallthru
          _
      $region16: #{tpu_custom_call.1} parent=5 // pred_fallthru
        _
      %p233 = scmp.le.s32.totalorder 1, %s18
      %p234 = scmp.lt.s32.totalorder %s18, 9
      %p235 = pnand %p233, %p234
      %p236 = pneg %p235
      // Predicated region
      $region29: #{tpu_custom_call.1} parent=5 // pred_check
        _
      $region30: #{tpu_custom_call.1} parent=5 // pred_check_branch
        %238 = sbr.rel (%p235) target = $region32
      $region31: #{tpu_custom_call.1} parent=5 // pred_region
        %s239 = ssub.s32 %s18, 1
        %s240 = sand.u32 %s54, 1
        %s241 = scalar_lea.sflag [#allocation3], %s240
        %s242 = sand.u32 %s54, 1
        %s243 = smul.addr %s242, 8
        %s244 = scalar_lea.vmem [#allocation2], %s243
        // Predicated region
        $region33: #{tpu_custom_call.1} parent=31 // pred_check
          %p245 = pneg %p67
        $region34: #{tpu_custom_call.1} parent=31 // pred_check_branch
          %247 = sbr.rel (%p245) target = $region36
        $region35: #{tpu_custom_call.1} parent=31 // pred_region
          %248 = dma.done %s241, 128
        $region36: #{tpu_custom_call.1} parent=31 // pred_fallthru
          _
        %s249 = sand.u32 %s23, 1
        %s250 = scalar_lea.sflag [#allocation6], %s249
        %s251 = sand.u32 %s82, 1
        %s252 = smul.addr %s251, 8
        %s253 = scalar_lea.vmem [#allocation5], %s252
        // Predicated region
        $region37: #{tpu_custom_call.1} parent=31 // pred_check
          %p254 = pneg %p95
        $region38: #{tpu_custom_call.1} parent=31 // pred_check_branch
          %256 = sbr.rel (%p254) target = $region40
        $region39: #{tpu_custom_call.1} parent=31 // pred_region
          %257 = dma.done %s250, 128
        $region40: #{tpu_custom_call.1} parent=31 // pred_fallthru
          _
        %s258 = sand.u32 %s23, 1
        %s259 = scalar_lea.sflag [#allocation6], %s258
        %s260 = sand.u32 %s110, 1
        %s261 = smul.addr %s260, 8
        %s262 = scalar_lea.vmem [#allocation7], %s261
        // Predicated region
        $region41: #{tpu_custom_call.1} parent=31 // pred_check
          %p263 = pneg %p123
        $region42: #{tpu_custom_call.1} parent=31 // pred_check_branch
          %265 = sbr.rel (%p263) target = $region44
        $region43: #{tpu_custom_call.1} parent=31 // pred_region
          %266 = dma.done %s259, 128
        $region44: #{tpu_custom_call.1} parent=31 // pred_fallthru
          _
        %s267 = sand.u32 %s54, 1
        %s268 = scalar_lea.sflag [#allocation3], %s267
        %s269 = sand.u32 %s54, 1
        %s270 = smul.addr %s269, 8
        %s271 = scalar_lea.vmem [#allocation2], %s270
        %p272 = pneg %p67
        %p273 = pneg %p64
        %s274 = sand.u32 %s23, 1
        %s275 = scalar_lea.sflag [#allocation6], %s274
        %s276 = sand.u32 %s82, 1
        %s277 = smul.addr %s276, 8
        %s278 = scalar_lea.vmem [#allocation5], %s277
        %p279 = pneg %p95
        %p280 = pneg %p92
        %s281 = sand.u32 %s23, 1
        %s282 = scalar_lea.sflag [#allocation6], %s281
        %s283 = sand.u32 %s110, 1
        %s284 = smul.addr %s283, 8
        %s285 = scalar_lea.vmem [#allocation7], %s284
        %p286 = pneg %p123
        %p287 = pneg %p120
        %p288 = pneg %p153
        %p289 = pneg %p150
        %s290 = sand.u32 %s140, 1
        %s291 = scalar_lea.sflag [#allocation4], %s290
        %s292 = sand.u32 %s140, 1
        %s293 = smul.addr %s292, 8
        %s294 = scalar_lea.vmem [#allocation8], %s293
        %v295 = vld [vmem:[%s244] sm:$0xff]
        %v296 = vld [vmem:[%s253] sm:$0xff]
        %v297 = vld [vmem:[%s262] sm:$0xff]
        %vm298 = vcmask 64512
        %v300 = vsel %vm298, %v295, 0
        %v303 = vsel %vm298, %v296, 0
        %305 = vmatprep.subr.mxu0 0.0
        %306 = vmatpush1.xpose.msra.mxu0 0.0
        %307 = vmatprep.subr.mxu0 0.0
        %308 = vmatpush1.xpose.msra.mxu0 0.0
        %309 = vmatprep.subr.mxu0 0.0
        %310 = vmatpush1.xpose.msra.mxu0 0.0
        %311 = vmatprep.subr.mxu0 0.0
        %312 = vmatpush1.xpose.msra.mxu0 0.0
        %313 = vmatprep.subr.mxu0 0.0
        %314 = vmatpush1.xpose.msra.mxu0 0.0
        %315 = vmatprep.subr.mxu0 0.0
        %316 = vmatpush1.xpose.msra.mxu0 0.0
        %317 = vmatprep.subr.mxu0 0.0
        %318 = vmatpush1.xpose.msra.mxu0 0.0
        %319 = vmatprep.subr.mxu0 0.0
        %320 = vmatpush1.xpose.msra.mxu0 0.0
        %321 = vmatprep.subr.mxu0 0.0
        %322 = vmatpush1.xpose.msra.mxu0 0.0
        %323 = vmatprep.subr.mxu0 0.0
        %324 = vmatpush1.xpose.msra.mxu0 0.0
        %325 = vmatprep.subr.mxu0 0.0
        %326 = vmatpush1.xpose.msra.mxu0 0.0
        %327 = vmatprep.subr.mxu0 0.0
        %328 = vmatpush1.xpose.msra.mxu0 0.0
        %329 = vmatprep.subr.mxu0 0.0
        %330 = vmatpush1.xpose.msra.mxu0 0.0
        %331 = vmatprep.subr.mxu0 0.0
        %332 = vmatpush1.xpose.msra.mxu0 0.0
        %333 = vmatprep.subr.mxu0 0.0
        %334 = vmatpush1.xpose.msra.mxu0 0.0
        %335 = vmatprep.subr.mxu0 0.0
        %336 = vmatpush1.xpose.msra.mxu0 %v303
        %337 = vmatprep.subr.mxu0 0.0
        %338 = vmatpush2.xpose.msra.mxu0 0.0
        %339 = vmatprep.subr.mxu0 0.0
        %340 = vmatpush2.xpose.msra.mxu0 0.0
        %341 = vmatprep.subr.mxu0 0.0
        %342 = vmatpush2.xpose.msra.mxu0 0.0
        %343 = vmatprep.subr.mxu0 0.0
        %344 = vmatpush2.xpose.msra.mxu0 0.0
        %345 = vmatprep.subr.mxu0 0.0
        %346 = vmatpush2.xpose.msra.mxu0 0.0
        %347 = vmatprep.subr.mxu0 0.0
        %348 = vmatpush2.xpose.msra.mxu0 0.0
        %349 = vmatprep.subr.mxu0 0.0
        %350 = vmatpush2.xpose.msra.mxu0 0.0
        %351 = vmatprep.subr.mxu0 0.0
        %352 = vmatpush2.xpose.msra.mxu0 0.0
        %353 = vmatprep.subr.mxu0 0.0
        %354 = vmatpush2.xpose.msra.mxu0 0.0
        %355 = vmatprep.subr.mxu0 0.0
        %356 = vmatpush2.xpose.msra.mxu0 0.0
        %357 = vmatprep.subr.mxu0 0.0
        %358 = vmatpush2.xpose.msra.mxu0 0.0
        %359 = vmatprep.subr.mxu0 0.0
        %360 = vmatpush2.xpose.msra.mxu0 0.0
        %361 = vmatprep.subr.mxu0 0.0
        %362 = vmatpush2.xpose.msra.mxu0 0.0
        %363 = vmatprep.subr.mxu0 0.0
        %364 = vmatpush2.xpose.msra.mxu0 0.0
        %365 = vmatprep.subr.mxu0 0.0
        %366 = vmatpush2.xpose.msra.mxu0 0.0
        %367 = vmatprep.subr.mxu0 0.0
        %368 = vmatpush2.xpose.msra.mxu0 0.0
        %369 = vmatprep.mubr.f32.mxu0 0.0
        %370 = vmatmul.mubr.f32.gmra.mxu0 %v300
        %v371 = vpop.f32.mrf.mxu0
        %v372 = vadd.f32 0.0, %v371
        %v373 = vpop.f32.mrf.mxu0
        %374 = vdwg.mxu0
        %v375 = vmul.f32 %v372, 0.35355338
        %s376 = smul.u32 %s30, 8
        %v377 = vlaneseq
        %v378 = vshrl.u32 %v377, 7
        %v379 = vstv %s376
        %v380 = vadd.s32 %v378, %v379
        %v381 = vlaneseq
        %v382 = vand.u32 %v381, 127
        %vm383 = vcmp.gt.s32.totalorder %v382, %v380
        %v384 = vsel %vm383, -1e+30, %v375
        %v385 = vsel %vm298, %v384, -inf
        %386 = vmax.xlane.f32.xlu0 %v385
        %v387 = vpop.xlane.xlu0 %386
        %v388 = vsub.f32 %v384, %v387
        %v389 = vmul.f32 %v388, 1.442695
        %v390 = vpow.pop %v389
        %v391 = vsel %vm298, %v390, 0.0
        %392 = vadd.xlane.f32.xlu0 %v391
        %v393 = vpop.xlane.xlu0 %392
        %v394 = vrcp.pop %v393
        %v395 = vmul.f32 %v390, %v394
        %v397 = vsel %vm298, %v395, 0
        %399 = vmatprep.subr.mxu0 0.0
        %400 = vmatpush1.msra.mxu0 0.0
        %401 = vmatprep.subr.mxu0 0.0
        %402 = vmatpush1.msra.mxu0 0.0
        %403 = vmatprep.subr.mxu0 0.0
        %404 = vmatpush1.msra.mxu0 0.0
        %405 = vmatprep.subr.mxu0 0.0
        %406 = vmatpush1.msra.mxu0 0.0
        %407 = vmatprep.subr.mxu0 0.0
        %408 = vmatpush1.msra.mxu0 0.0
        %409 = vmatprep.subr.mxu0 0.0
        %410 = vmatpush1.msra.mxu0 0.0
        %411 = vmatprep.subr.mxu0 0.0
        %412 = vmatpush1.msra.mxu0 0.0
        %413 = vmatprep.subr.mxu0 0.0
        %414 = vmatpush1.msra.mxu0 0.0
        %415 = vmatprep.subr.mxu0 0.0
        %416 = vmatpush1.msra.mxu0 0.0
        %417 = vmatprep.subr.mxu0 0.0
        %418 = vmatpush1.msra.mxu0 0.0
        %419 = vmatprep.subr.mxu0 0.0
        %420 = vmatpush1.msra.mxu0 0.0
        %421 = vmatprep.subr.mxu0 0.0
        %422 = vmatpush1.msra.mxu0 0.0
        %423 = vmatprep.subr.mxu0 0.0
        %424 = vmatpush1.msra.mxu0 0.0
        %425 = vmatprep.subr.mxu0 0.0
        %426 = vmatpush1.msra.mxu0 0.0
        %427 = vmatprep.subr.mxu0 0.0
        %428 = vmatpush1.msra.mxu0 0.0
        %429 = vmatprep.subr.mxu0 0.0
        %430 = vmatpush1.msra.mxu0 %v297
        %431 = vmatprep.subr.mxu0 0.0
        %432 = vmatpush2.msra.mxu0 0.0
        %433 = vmatprep.subr.mxu0 0.0
        %434 = vmatpush2.msra.mxu0 0.0
        %435 = vmatprep.subr.mxu0 0.0
        %436 = vmatpush2.msra.mxu0 0.0
        %437 = vmatprep.subr.mxu0 0.0
        %438 = vmatpush2.msra.mxu0 0.0
        %439 = vmatprep.subr.mxu0 0.0
        %440 = vmatpush2.msra.mxu0 0.0
        %441 = vmatprep.subr.mxu0 0.0
        %442 = vmatpush2.msra.mxu0 0.0
        %443 = vmatprep.subr.mxu0 0.0
        %444 = vmatpush2.msra.mxu0 0.0
        %445 = vmatprep.subr.mxu0 0.0
        %446 = vmatpush2.msra.mxu0 0.0
        %447 = vmatprep.subr.mxu0 0.0
        %448 = vmatpush2.msra.mxu0 0.0
        %449 = vmatprep.subr.mxu0 0.0
        %450 = vmatpush2.msra.mxu0 0.0
        %451 = vmatprep.subr.mxu0 0.0
        %452 = vmatpush2.msra.mxu0 0.0
        %453 = vmatprep.subr.mxu0 0.0
        %454 = vmatpush2.msra.mxu0 0.0
        %455 = vmatprep.subr.mxu0 0.0
        %456 = vmatpush2.msra.mxu0 0.0
        %457 = vmatprep.subr.mxu0 0.0
        %458 = vmatpush2.msra.mxu0 0.0
        %459 = vmatprep.subr.mxu0 0.0
        %460 = vmatpush2.msra.mxu0 0.0
        %461 = vmatprep.subr.mxu0 0.0
        %462 = vmatpush2.msra.mxu0 0.0
        %463 = vmatprep.mubr.f32.mxu0 0.0
        %464 = vmatmul.mubr.f32.gmra.mxu0 %v397
        %v465 = vpop.f32.mrf.mxu0
        %v466 = vadd.f32 0.0, %v465
        %v467 = vpop.f32.mrf.mxu0
        %468 = vdwg.mxu0
        %469 = vst.msk [vmem:[%s294] sm:$0xff] %vm298, %v466
        %s470 = sand.u32 %s140, 1
        %s471 = scalar_lea.sflag [#allocation4], %s470
        %s472 = sand.u32 %s140, 1
        %s473 = smul.addr %s472, 8
        %s474 = scalar_lea.vmem [#allocation8], %s473
        // Predicated region
        $region45: #{tpu_custom_call.1} parent=31 // pred_check
          %p475 = pneg %p150
        $region46: #{tpu_custom_call.1} parent=31 // pred_check_branch
          %477 = sbr.rel (%p475) target = $region48
        $region47: #{tpu_custom_call.1} parent=31 // pred_region
          %s479 = ssub.s32 128, 128
          %480 = vsyncadd %s471, %s479
          %s481 = sadd.s32 %s30, %s29
          %s482 = smul.addr %s28, 4
          %s483 = sadd.s32 %s481, %s482
          %s484 = smul.addr %s483, 128
          %s485 = scalar_lea.hbm %s3, %s484
          %s487 = sshll.u32 %s474, 4
          %s488 = int_to_ptr.vmem [resolvable:$true] %s487
          %490 = dma.vmem_to_hbm [thread:$0]  %s488, 128, %s485, %s471
        $region48: #{tpu_custom_call.1} parent=31 // pred_fallthru
          _
      $region32: #{tpu_custom_call.1} parent=5 // pred_fallthru
        _
      %p491 = scmp.le.s32.totalorder 2, %s18
      // Predicated region
      $region49: #{tpu_custom_call.1} parent=5 // pred_check
        %p492 = pneg %p491
      $region50: #{tpu_custom_call.1} parent=5 // pred_check_branch
        %494 = sbr.rel (%p492) target = $region52
      $region51: #{tpu_custom_call.1} parent=5 // pred_region
        %s495 = ssub.s32 %s18, 2
        // Predicated region
        $region53: #{tpu_custom_call.1} parent=51 // pred_check
          %p496 = pneg %p156
        $region54: #{tpu_custom_call.1} parent=51 // pred_check_branch
          %498 = sbr.rel (%p496) target = $region56
        $region55: #{tpu_custom_call.1} parent=51 // pred_region
          %s499 = sand.u32 %s141, 1
          %s500 = scalar_lea.sflag [#allocation4], %s499
          %s501 = sand.u32 %s141, 1
          %s502 = smul.addr %s501, 8
          %s503 = scalar_lea.vmem [#allocation8], %s502
          %504 = dma.done %s500, 128
        $region56: #{tpu_custom_call.1} parent=51 // pred_fallthru
          _
      $region52: #{tpu_custom_call.1} parent=5 // pred_fallthru
        _
    $region6: #{tpu_custom_call.1} parent=1 // loop_footer
      %s22 = sadd.s32 1, %s18
    $region7: #{tpu_custom_call.1} parent=1 // loop_footer_branch
      %17 = sbr.rel target = $region3
    $region8: #{tpu_custom_call.1} parent=1 // loop_exit
      _
    %505 = vsyncpa [#allocation3], 1
    %s506 = scalar_lea.sflag [#allocation3], 1
    %507 = vsyncpa %s506, 1
    %508 = vsyncpa [#allocation6], 1
    %s509 = scalar_lea.sflag [#allocation6], 1
    %510 = vsyncpa %s509, 1
    %511 = vsyncpa [#allocation4], 1
    %s512 = scalar_lea.sflag [#allocation4], 1
    %513 = vsyncpa %s512, 1

</llo_original>
